<compile_context>
chip_gen: v7x
topology: tpu7x:2x2x1
jax: 0.10.0
libtpu: 0.0.40
codegen_flags: <defaults>
</compile_context>

<pallas_src>
import functools

import jax
import jax.numpy as jnp
from jax.experimental import pallas as pl
from jax.experimental.pallas import tpu as pltpu


def _round_up(x, m):
    return ((x + m - 1) // m) * m


# ----------------------------------------------------------------------------
# Fused Pallas kernel: h = x ; for each layer: h = relu(h @ W_i + b_i)
# ----------------------------------------------------------------------------
def _fused_mlp_kernel(x_ref, *rest, n_layers):
    """rest = (w0, b0, w1, b1, ..., w{L-1}, b{L-1}, o_ref)."""
    o_ref = rest[2 * n_layers]
    h = x_ref[...]                                   # (TM, Fp) float32
    for i in range(n_layers):                        # statically unrolled
        w = rest[2 * i][...]                         # (Kp, Np) bfloat16
        b = rest[2 * i + 1][...]                     # (1,  Np) float32
        y = jnp.dot(h.astype(w.dtype), w,            # bf16 MXU, f32 accumulate
                    preferred_element_type=jnp.float32)
        h = jnp.maximum(y + b, 0.0)                  # f32 epilogue (bias + ReLU)
    o_ref[...] = h.astype(o_ref.dtype)


# ----------------------------------------------------------------------------
# Parameter construction (mirrors the PyTorch layer-list logic).
# ----------------------------------------------------------------------------
def build_network_params(key, n_features, channels):
    """Returns raw f32 params: list of (w_t (in, out), b (out,))."""
    channels = list(channels)
    channels.insert(0, n_features)                   # mutate, as the torch code does
    decoder_chn = channels[::-1]
    k = len(channels) - 1

    layer_dims = [(channels[i], channels[i + 1]) for i in range(k)]
    # decoder[:-2] drops the last (Linear, ReLU) pair -> only k-1 decoder layers
    layer_dims += [(decoder_chn[i], decoder_chn[i + 1]) for i in range(k - 1)]

    params = []
    for fan_in, fan_out in layer_dims:
        key, kw, kb = jax.random.split(key, 3)
        bound = 1.0 / (fan_in ** 0.5)
        w = jax.random.uniform(kw, (fan_out, fan_in), jnp.float32, -bound, bound)
        b = jax.random.uniform(kb, (fan_out,), jnp.float32, -bound, bound)
        params.append((w.T, b))                      # store pre-transposed (in, out)
    return params


def pad_params(params_raw):
    """Zero-pad every layer to lane-dense (multiple-of-128) widths.

    Returns list of (w_padded bf16 (Kp, Np), b_padded f32 (1, Np), true_out_dim).
    """
    padded = []
    for w_t, b in params_raw:
        K, N = w_t.shape
        Kp, Np = _round_up(K, 128), _round_up(N, 128)
        w_p = jnp.zeros((Kp, Np), jnp.float32).at[:K, :N].set(w_t)
        w_p = w_p.astype(jnp.bfloat16)               # bf16 operands for the MXU
        b_p = jnp.zeros((1, Np), jnp.float32).at[0, :N].set(b)
        padded.append((w_p, b_p, N))
    return padded


# ----------------------------------------------------------------------------
# Forward pass: single fused pallas_call.
# ----------------------------------------------------------------------------
def network_forward(x, padded_params, tile_m=256):
    M, F = x.shape
    n_layers = len(padded_params)
    Fp = padded_params[0][0].shape[0]
    n_out = padded_params[-1][2]
    Np_out = padded_params[-1][1].shape[1]
    assert Fp >= F

    flat = []
    for w_p, b_p, _ in padded_params:
        flat.extend([w_p, b_p])

    kernel = functools.partial(_fused_mlp_kernel, n_layers=n_layers)

    if M <= tile_m:
        # Tiny batch: no grid, one full-array VMEM block per operand.
        Mp = _round_up(max(M, 1), 8)
        x_p = jnp.zeros((Mp, Fp), x.dtype).at[:M, :F].set(x)
        vmem = lambda: pl.BlockSpec(memory_space=pltpu.MemorySpace.VMEM)
        out = pl.pallas_call(
            kernel,
            out_shape=jax.ShapeDtypeStruct((Mp, Np_out), x.dtype),
            in_specs=[vmem() for _ in range(1 + 2 * n_layers)],
            out_specs=vmem(),
        )(x_p, *flat)
    else:
        # Real batch: tile the batch (sublane) axis, keep weights VMEM-resident
        # (constant block index every step), mark the grid axis 'parallel'.
        Mg = _round_up(M, tile_m)
        x_p = jnp.zeros((Mg, Fp), x.dtype).at[:M, :F].set(x)
        in_specs = [pl.BlockSpec((tile_m, Fp), lambda i: (i, 0))]
        for w_p, b_p, _ in padded_params:
            in_specs.append(pl.BlockSpec(w_p.shape, lambda i: (0, 0)))
            in_specs.append(pl.BlockSpec(b_p.shape, lambda i: (0, 0)))
        out = pl.pallas_call(
            kernel,
            out_shape=jax.ShapeDtypeStruct((Mg, Np_out), x.dtype),
            grid=(Mg // tile_m,),
            in_specs=in_specs,
            out_specs=pl.BlockSpec((tile_m, Np_out), lambda i: (i, 0)),
            compiler_params=pltpu.CompilerParams(
                dimension_semantics=("parallel",)),
        )(x_p, *flat)

    # Only HBM traffic is x in / padded output out; slice back to true width.
    return out[:M, :n_out]


# ----------------------------------------------------------------------------
# Plain-JAX reference (same bf16-operand / f32-accumulate math as the kernel).
# ----------------------------------------------------------------------------
def network_forward_reference(x, params_raw):
    h = x
    for w_t, b in params_raw:
        y = jnp.dot(h.astype(jnp.bfloat16), w_t.astype(jnp.bfloat16),
                    preferred_element_type=jnp.float32)
        h = jnp.maximum(y + b, 0.0)
    return h


# ----------------------------------------------------------------------------
if __name__ == "__main__":
    key = jax.random.PRNGKey(0)
    key, kx, kp = jax.random.split(key, 3)

    batch = 8
    n_features = 32
    channels = [24, 16, 8]     # encoder: 32->24->16->8, decoder: 8->16->24

    params_raw = build_network_params(kp, n_features, channels)
    padded_params = pad_params(params_raw)

    # Small batch: single fused no-grid call.
    x = jax.random.normal(kx, (batch, n_features), dtype=jnp.float32)
    out = jax.block_until_ready(network_forward(x, padded_params))
    ref = network_forward_reference(x, params_raw)
    assert out.shape == (batch, 24), out.shape
    assert jnp.allclose(out, ref, atol=1e-4, rtol=1e-4), "mismatch (small batch)"

    # Larger batch: exercises the batch-tiled 'parallel' grid path.
    xl = jax.random.normal(jax.random.PRNGKey(1), (600, n_features), jnp.float32)
    outl = jax.block_until_ready(network_forward(xl, padded_params))
    refl = network_forward_reference(xl, params_raw)
    assert outl.shape == (600, 24), outl.shape
    assert jnp.allclose(outl, refl, atol=1e-4, rtol=1e-4), "mismatch (tiled batch)"

    print("KERNEL_OK")
</pallas_src>

<mosaic_0001>
module attributes {stable_mosaic.version = 11 : i64} {
  func.func @_fused_mlp_kernel(%arg0: memref<8x128xf32, #tpu.memory_space<vmem>>, %arg1: memref<128x128xbf16, #tpu.memory_space<vmem>>, %arg2: memref<1x128xf32, #tpu.memory_space<vmem>>, %arg3: memref<128x128xbf16, #tpu.memory_space<vmem>>, %arg4: memref<1x128xf32, #tpu.memory_space<vmem>>, %arg5: memref<128x128xbf16, #tpu.memory_space<vmem>>, %arg6: memref<1x128xf32, #tpu.memory_space<vmem>>, %arg7: memref<128x128xbf16, #tpu.memory_space<vmem>>, %arg8: memref<1x128xf32, #tpu.memory_space<vmem>>, %arg9: memref<128x128xbf16, #tpu.memory_space<vmem>>, %arg10: memref<1x128xf32, #tpu.memory_space<vmem>>, %arg11: memref<8x128xf32, #tpu.memory_space<vmem>>) attributes {dimension_semantics = [], scalar_prefetch = 0 : i64, scratch_operands = 0 : i64, tpu.core_type = #tpu.core_type<tc>} {
    %c0 = arith.constant 0 : index
    %c0_0 = arith.constant 0 : index
    %0 = vector.load %arg0[%c0, %c0_0] : memref<8x128xf32, #tpu.memory_space<vmem>>, vector<8x128xf32>
    %c0_1 = arith.constant 0 : index
    %c0_2 = arith.constant 0 : index
    %1 = vector.load %arg1[%c0_1, %c0_2] : memref<128x128xbf16, #tpu.memory_space<vmem>>, vector<128x128xbf16>
    %c0_3 = arith.constant 0 : index
    %c0_4 = arith.constant 0 : index
    %2 = vector.load %arg2[%c0_3, %c0_4] : memref<1x128xf32, #tpu.memory_space<vmem>>, vector<1x128xf32>
    %3 = arith.truncf %0 : vector<8x128xf32> to vector<8x128xbf16>
    %cst = arith.constant dense<0.000000e+00> : vector<8x128xf32>
    %4 = tpu.matmul %3, %1, %cst {dimension_numbers = #tpu.dot_dimension_numbers<[1], [0], [0], [1], [0, 0, 1, 1], [], []>} : vector<8x128xbf16>, vector<128x128xbf16>, vector<8x128xf32> -> vector<8x128xf32>
    %5 = vector.broadcast %2 : vector<1x128xf32> to vector<8x128xf32>
    %6 = arith.addf %4, %5 : vector<8x128xf32>
    %cst_5 = arith.constant 0.000000e+00 : f32
    %7 = vector.broadcast %cst_5 : f32 to vector<8x128xf32>
    %8 = arith.maximumf %6, %7 : vector<8x128xf32>
    %c0_6 = arith.constant 0 : index
    %c0_7 = arith.constant 0 : index
    %9 = vector.load %arg3[%c0_6, %c0_7] : memref<128x128xbf16, #tpu.memory_space<vmem>>, vector<128x128xbf16>
    %c0_8 = arith.constant 0 : index
    %c0_9 = arith.constant 0 : index
    %10 = vector.load %arg4[%c0_8, %c0_9] : memref<1x128xf32, #tpu.memory_space<vmem>>, vector<1x128xf32>
    %11 = arith.truncf %8 : vector<8x128xf32> to vector<8x128xbf16>
    %cst_10 = arith.constant dense<0.000000e+00> : vector<8x128xf32>
    %12 = tpu.matmul %11, %9, %cst_10 {dimension_numbers = #tpu.dot_dimension_numbers<[1], [0], [0], [1], [0, 0, 1, 1], [], []>} : vector<8x128xbf16>, vector<128x128xbf16>, vector<8x128xf32> -> vector<8x128xf32>
    %13 = vector.broadcast %10 : vector<1x128xf32> to vector<8x128xf32>
    %14 = arith.addf %12, %13 : vector<8x128xf32>
    %cst_11 = arith.constant 0.000000e+00 : f32
    %15 = vector.broadcast %cst_11 : f32 to vector<8x128xf32>
    %16 = arith.maximumf %14, %15 : vector<8x128xf32>
    %c0_12 = arith.constant 0 : index
    %c0_13 = arith.constant 0 : index
    %17 = vector.load %arg5[%c0_12, %c0_13] : memref<128x128xbf16, #tpu.memory_space<vmem>>, vector<128x128xbf16>
    %c0_14 = arith.constant 0 : index
    %c0_15 = arith.constant 0 : index
    %18 = vector.load %arg6[%c0_14, %c0_15] : memref<1x128xf32, #tpu.memory_space<vmem>>, vector<1x128xf32>
    %19 = arith.truncf %16 : vector<8x128xf32> to vector<8x128xbf16>
    %cst_16 = arith.constant dense<0.000000e+00> : vector<8x128xf32>
    %20 = tpu.matmul %19, %17, %cst_16 {dimension_numbers = #tpu.dot_dimension_numbers<[1], [0], [0], [1], [0, 0, 1, 1], [], []>} : vector<8x128xbf16>, vector<128x128xbf16>, vector<8x128xf32> -> vector<8x128xf32>
    %21 = vector.broadcast %18 : vector<1x128xf32> to vector<8x128xf32>
    %22 = arith.addf %20, %21 : vector<8x128xf32>
    %cst_17 = arith.constant 0.000000e+00 : f32
    %23 = vector.broadcast %cst_17 : f32 to vector<8x128xf32>
    %24 = arith.maximumf %22, %23 : vector<8x128xf32>
    %c0_18 = arith.constant 0 : index
    %c0_19 = arith.constant 0 : index
    %25 = vector.load %arg7[%c0_18, %c0_19] : memref<128x128xbf16, #tpu.memory_space<vmem>>, vector<128x128xbf16>
    %c0_20 = arith.constant 0 : index
    %c0_21 = arith.constant 0 : index
    %26 = vector.load %arg8[%c0_20, %c0_21] : memref<1x128xf32, #tpu.memory_space<vmem>>, vector<1x128xf32>
    %27 = arith.truncf %24 : vector<8x128xf32> to vector<8x128xbf16>
    %cst_22 = arith.constant dense<0.000000e+00> : vector<8x128xf32>
    %28 = tpu.matmul %27, %25, %cst_22 {dimension_numbers = #tpu.dot_dimension_numbers<[1], [0], [0], [1], [0, 0, 1, 1], [], []>} : vector<8x128xbf16>, vector<128x128xbf16>, vector<8x128xf32> -> vector<8x128xf32>
    %29 = vector.broadcast %26 : vector<1x128xf32> to vector<8x128xf32>
    %30 = arith.addf %28, %29 : vector<8x128xf32>
    %cst_23 = arith.constant 0.000000e+00 : f32
    %31 = vector.broadcast %cst_23 : f32 to vector<8x128xf32>
    %32 = arith.maximumf %30, %31 : vector<8x128xf32>
    %c0_24 = arith.constant 0 : index
    %c0_25 = arith.constant 0 : index
    %33 = vector.load %arg9[%c0_24, %c0_25] : memref<128x128xbf16, #tpu.memory_space<vmem>>, vector<128x128xbf16>
    %c0_26 = arith.constant 0 : index
    %c0_27 = arith.constant 0 : index
    %34 = vector.load %arg10[%c0_26, %c0_27] : memref<1x128xf32, #tpu.memory_space<vmem>>, vector<1x128xf32>
    %35 = arith.truncf %32 : vector<8x128xf32> to vector<8x128xbf16>
    %cst_28 = arith.constant dense<0.000000e+00> : vector<8x128xf32>
    %36 = tpu.matmul %35, %33, %cst_28 {dimension_numbers = #tpu.dot_dimension_numbers<[1], [0], [0], [1], [0, 0, 1, 1], [], []>} : vector<8x128xbf16>, vector<128x128xbf16>, vector<8x128xf32> -> vector<8x128xf32>
    %37 = vector.broadcast %34 : vector<1x128xf32> to vector<8x128xf32>
    %38 = arith.addf %36, %37 : vector<8x128xf32>
    %cst_29 = arith.constant 0.000000e+00 : f32
    %39 = vector.broadcast %cst_29 : f32 to vector<8x128xf32>
    %40 = arith.maximumf %38, %39 : vector<8x128xf32>
    %c0_30 = arith.constant 0 : index
    %c0_31 = arith.constant 0 : index
    %41 = vector.load %arg11[%c0_30, %c0_31] : memref<8x128xf32, #tpu.memory_space<vmem>>, vector<8x128xf32>
    tpu.vector_store %arg11[%c0_30, %c0_31], %40 {strides = array<i32>} : memref<8x128xf32, #tpu.memory_space<vmem>>, vector<8x128xf32>,
    return
  }
}

</mosaic_0001>

<llo_original>
// kernel: tpu_custom_call.1
$region0: #{tpu_custom_call.1}
  #allocation0 [shape = 'u32[]', space=smem, size = 0x4, offset = 0x4, fixed_abs, tag = 'smem constant byte address 0x4 - core index']
  #allocation1 [shape = 'u32[144,128]{1,0:T(1,128)}', space=vmem, size = 0x12000, scoped, tag = 'internal scratch']
  %s0 = inlined_call_operand.hbm [shape: f32[8,128], index: 0, kind: input, shape index: {}]
  %s1 = inlined_call_operand.hbm [shape: bf16[128,128], index: 1, kind: input, shape index: {}]
  %s2 = inlined_call_operand.vmem [shape: f32[1,128], index: 2, kind: input, shape index: {}]
  %s3 = inlined_call_operand.hbm [shape: bf16[128,128], index: 3, kind: input, shape index: {}]
  %s4 = inlined_call_operand.vmem [shape: f32[1,128], index: 4, kind: input, shape index: {}]
  %s5 = inlined_call_operand.hbm [shape: bf16[128,128], index: 5, kind: input, shape index: {}]
  %s6 = inlined_call_operand.vmem [shape: f32[1,128], index: 6, kind: input, shape index: {}]
  %s7 = inlined_call_operand.hbm [shape: bf16[128,128], index: 7, kind: input, shape index: {}]
  %s8 = inlined_call_operand.vmem [shape: f32[1,128], index: 8, kind: input, shape index: {}]
  %s9 = inlined_call_operand.hbm [shape: bf16[128,128], index: 9, kind: input, shape index: {}]
  %s10 = inlined_call_operand.vmem [shape: f32[1,128], index: 10, kind: input, shape index: {}]
  %s11 = inlined_call_operand.hbm [shape: f32[8,128], index: 11, kind: output, shape index: {}]
  %s12 = sld [smem:[#allocation0]]
  $region78: #{tpu_custom_call.1} parent=0
    _
  %s14 = ssub.s32 1, %s12
  %s15 = scalar_select 0, %s14, %s12
  $region1: #{tpu_custom_call.1} parent=0
    #allocation2 [shape = 'u8[4096]{0}', space=vmem, size = 0x1000, scoped, tag = 'input window, operand 0, single buffered']
    #allocation3 [shape = 's32[1]{0}', space=sflag, size = 0x4, scoped, tag = 'scoped memory for tpu_custom_call.1']
    #allocation4 [shape = 's32[1]{0}', space=sflag, size = 0x4, scoped, tag = 'scoped memory for tpu_custom_call.1']
    #allocation5 [shape = 'u8[32768]{0}', space=vmem, size = 0x8000, scoped, tag = 'input window, operand 1, single buffered']
    #allocation6 [shape = 's32[1]{0}', space=sflag, size = 0x4, scoped, tag = 'scoped memory for tpu_custom_call.1']
    #allocation7 [shape = 'u8[32768]{0}', space=vmem, size = 0x8000, scoped, tag = 'input window, operand 3, single buffered']
    #allocation8 [shape = 'u8[32768]{0}', space=vmem, size = 0x8000, scoped, tag = 'input window, operand 5, single buffered']
    #allocation9 [shape = 's32[1]{0}', space=sflag, size = 0x4, scoped, tag = 'scoped memory for tpu_custom_call.1']
    #allocation10 [shape = 'u8[32768]{0}', space=vmem, size = 0x8000, scoped, tag = 'input window, operand 7, single buffered']
    #allocation11 [shape = 'u8[32768]{0}', space=vmem, size = 0x8000, scoped, tag = 'input window, operand 9, single buffered']
    #allocation12 [shape = 's32[1]{0}', space=sflag, size = 0x4, scoped, tag = 'scoped memory for tpu_custom_call.1']
    #allocation13 [shape = 'u8[4096]{0}', space=vmem, size = 0x1000, scoped, tag = 'output window, operand 0, single buffered']
    %16 = vsyncpa [#allocation3], 0
    %17 = vsyncpa [#allocation6], 0
    %18 = vsyncpa [#allocation9], 0
    %19 = vsyncpa [#allocation12], 0
    %20 = vsyncpa [#allocation4], 0
    // Predicated region
    $region2: #{tpu_custom_call.1} parent=1 // pred_check
      _
    $region3: #{tpu_custom_call.1} parent=1 // pred_check_branch
      %22 = sbr.rel (0) target = $region5
    $region4: #{tpu_custom_call.1} parent=1 // pred_region
      %s24 = ssub.s32 128, 128
      %25 = vsyncadd [#allocation3], %s24
      %s27 = sshll.u32 [#allocation2], 4
      %s28 = int_to_ptr.vmem [resolvable:$true] %s27
      %30 = dma.hbm_to_vmem [thread:$0]  %s0, 128, %s28, [#allocation3]
    $region5: #{tpu_custom_call.1} parent=1 // pred_fallthru
      _
    // Predicated region
    $region6: #{tpu_custom_call.1} parent=1 // pred_check
      _
    $region7: #{tpu_custom_call.1} parent=1 // pred_check_branch
      %32 = sbr.rel (0) target = $region9
    $region8: #{tpu_custom_call.1} parent=1 // pred_region
      %s34 = ssub.s32 1024, 1024
      %35 = vsyncadd [#allocation6], %s34
      %s36 = sshll.u32 [#allocation5], 4
      %s37 = int_to_ptr.vmem [resolvable:$true] %s36
      %42 = dma.hbm_to_vmem [thread:$0]  %s1, 1024, %s37, [#allocation6], 64, 64, 4
    $region9: #{tpu_custom_call.1} parent=1 // pred_fallthru
      _
    // Predicated region
    $region10: #{tpu_custom_call.1} parent=1 // pred_check
      _
    $region11: #{tpu_custom_call.1} parent=1 // pred_check_branch
      %44 = sbr.rel (0) target = $region13
    $region12: #{tpu_custom_call.1} parent=1 // pred_region
      _
    $region13: #{tpu_custom_call.1} parent=1 // pred_fallthru
      _
    // Predicated region
    $region14: #{tpu_custom_call.1} parent=1 // pred_check
      _
    $region15: #{tpu_custom_call.1} parent=1 // pred_check_branch
      %46 = sbr.rel (0) target = $region17
    $region16: #{tpu_custom_call.1} parent=1 // pred_region
      %s48 = ssub.s32 1024, 1024
      %49 = vsyncadd [#allocation6], %s48
      %s50 = sshll.u32 [#allocation7], 4
      %s51 = int_to_ptr.vmem [resolvable:$true] %s50
      %56 = dma.hbm_to_vmem [thread:$0]  %s3, 1024, %s51, [#allocation6], 64, 64, 4
    $region17: #{tpu_custom_call.1} parent=1 // pred_fallthru
      _
    // Predicated region
    $region18: #{tpu_custom_call.1} parent=1 // pred_check
      _
    $region19: #{tpu_custom_call.1} parent=1 // pred_check_branch
      %58 = sbr.rel (0) target = $region21
    $region20: #{tpu_custom_call.1} parent=1 // pred_region
      _
    $region21: #{tpu_custom_call.1} parent=1 // pred_fallthru
      _
    // Predicated region
    $region22: #{tpu_custom_call.1} parent=1 // pred_check
      _
    $region23: #{tpu_custom_call.1} parent=1 // pred_check_branch
      %60 = sbr.rel (0) target = $region25
    $region24: #{tpu_custom_call.1} parent=1 // pred_region
      %s62 = ssub.s32 1024, 1024
      %63 = vsyncadd [#allocation9], %s62
      %s64 = sshll.u32 [#allocation8], 4
      %s65 = int_to_ptr.vmem [resolvable:$true] %s64
      %70 = dma.hbm_to_vmem [thread:$0]  %s5, 1024, %s65, [#allocation9], 64, 64, 4
    $region25: #{tpu_custom_call.1} parent=1 // pred_fallthru
      _
    // Predicated region
    $region26: #{tpu_custom_call.1} parent=1 // pred_check
      _
    $region27: #{tpu_custom_call.1} parent=1 // pred_check_branch
      %72 = sbr.rel (0) target = $region29
    $region28: #{tpu_custom_call.1} parent=1 // pred_region
      _
    $region29: #{tpu_custom_call.1} parent=1 // pred_fallthru
      _
    // Predicated region
    $region30: #{tpu_custom_call.1} parent=1 // pred_check
      _
    $region31: #{tpu_custom_call.1} parent=1 // pred_check_branch
      %74 = sbr.rel (0) target = $region33
    $region32: #{tpu_custom_call.1} parent=1 // pred_region
      %s76 = ssub.s32 1024, 1024
      %77 = vsyncadd [#allocation9], %s76
      %s78 = sshll.u32 [#allocation10], 4
      %s79 = int_to_ptr.vmem [resolvable:$true] %s78
      %84 = dma.hbm_to_vmem [thread:$0]  %s7, 1024, %s79, [#allocation9], 64, 64, 4
    $region33: #{tpu_custom_call.1} parent=1 // pred_fallthru
      _
    // Predicated region
    $region34: #{tpu_custom_call.1} parent=1 // pred_check
      _
    $region35: #{tpu_custom_call.1} parent=1 // pred_check_branch
      %86 = sbr.rel (0) target = $region37
    $region36: #{tpu_custom_call.1} parent=1 // pred_region
      _
    $region37: #{tpu_custom_call.1} parent=1 // pred_fallthru
      _
    // Predicated region
    $region38: #{tpu_custom_call.1} parent=1 // pred_check
      _
    $region39: #{tpu_custom_call.1} parent=1 // pred_check_branch
      %88 = sbr.rel (0) target = $region41
    $region40: #{tpu_custom_call.1} parent=1 // pred_region
      %s90 = ssub.s32 1024, 1024
      %91 = vsyncadd [#allocation12], %s90
      %s92 = sshll.u32 [#allocation11], 4
      %s93 = int_to_ptr.vmem [resolvable:$true] %s92
      %98 = dma.hbm_to_vmem [thread:$0]  %s9, 1024, %s93, [#allocation12], 64, 64, 4
    $region41: #{tpu_custom_call.1} parent=1 // pred_fallthru
      _
    // Predicated region
    $region42: #{tpu_custom_call.1} parent=1 // pred_check
      _
    $region43: #{tpu_custom_call.1} parent=1 // pred_check_branch
      %100 = sbr.rel (0) target = $region45
    $region44: #{tpu_custom_call.1} parent=1 // pred_region
      _
    $region45: #{tpu_custom_call.1} parent=1 // pred_fallthru
      _
    // Predicated region
    $region46: #{tpu_custom_call.1} parent=1 // pred_check
      _
    $region47: #{tpu_custom_call.1} parent=1 // pred_check_branch
      %102 = sbr.rel (0) target = $region49
    $region48: #{tpu_custom_call.1} parent=1 // pred_region
      %103 = dma.done [#allocation3], 128
    $region49: #{tpu_custom_call.1} parent=1 // pred_fallthru
      _
    // Predicated region
    $region50: #{tpu_custom_call.1} parent=1 // pred_check
      _
    $region51: #{tpu_custom_call.1} parent=1 // pred_check_branch
      %105 = sbr.rel (0) target = $region53
    $region52: #{tpu_custom_call.1} parent=1 // pred_region
      %106 = dma.done [#allocation6], 1024
    $region53: #{tpu_custom_call.1} parent=1 // pred_fallthru
      _
    // Predicated region
    $region54: #{tpu_custom_call.1} parent=1 // pred_check
      _
    $region55: #{tpu_custom_call.1} parent=1 // pred_check_branch
      %108 = sbr.rel (0) target = $region57
    $region56: #{tpu_custom_call.1} parent=1 // pred_region
      %109 = dma.done [#allocation6], 1024
    $region57: #{tpu_custom_call.1} parent=1 // pred_fallthru
      _
    // Predicated region
    $region58: #{tpu_custom_call.1} parent=1 // pred_check
      _
    $region59: #{tpu_custom_call.1} parent=1 // pred_check_branch
      %111 = sbr.rel (0) target = $region61
    $region60: #{tpu_custom_call.1} parent=1 // pred_region
      %112 = dma.done [#allocation9], 1024
    $region61: #{tpu_custom_call.1} parent=1 // pred_fallthru
      _
    // Predicated region
    $region62: #{tpu_custom_call.1} parent=1 // pred_check
      _
    $region63: #{tpu_custom_call.1} parent=1 // pred_check_branch
      %114 = sbr.rel (0) target = $region65
    $region64: #{tpu_custom_call.1} parent=1 // pred_region
      %115 = dma.done [#allocation9], 1024
    $region65: #{tpu_custom_call.1} parent=1 // pred_fallthru
      _
    // Predicated region
    $region66: #{tpu_custom_call.1} parent=1 // pred_check
      _
    $region67: #{tpu_custom_call.1} parent=1 // pred_check_branch
      %117 = sbr.rel (0) target = $region69
    $region68: #{tpu_custom_call.1} parent=1 // pred_region
      %118 = dma.done [#allocation12], 1024
    $region69: #{tpu_custom_call.1} parent=1 // pred_fallthru
      _
    %v120 = vld [vmem:[#allocation2] sm:$0xff]
    %v121 = vld [vmem:[#allocation5] sm:$0xf]
    %v122 = vld [vmem:[#allocation5 + $0x4] sm:$0xf]
    %v123 = vld [vmem:[#allocation5 + $0x8] sm:$0xf]
    %v124 = vld [vmem:[#allocation5 + $0xc] sm:$0xf]
    %v125 = vld [vmem:[#allocation5 + $0x10] sm:$0xf]
    %v126 = vld [vmem:[#allocation5 + $0x14] sm:$0xf]
    %v127 = vld [vmem:[#allocation5 + $0x18] sm:$0xf]
    %v128 = vld [vmem:[#allocation5 + $0x1c] sm:$0xf]
    %v129 = vld [vmem:[#allocation5 + $0x20] sm:$0xf]
    %v130 = vld [vmem:[#allocation5 + $0x24] sm:$0xf]
    %v131 = vld [vmem:[#allocation5 + $0x28] sm:$0xf]
    %v132 = vld [vmem:[#allocation5 + $0x2c] sm:$0xf]
    %v133 = vld [vmem:[#allocation5 + $0x30] sm:$0xf]
    %v134 = vld [vmem:[#allocation5 + $0x34] sm:$0xf]
    %v135 = vld [vmem:[#allocation5 + $0x38] sm:$0xf]
    %v136 = vld [vmem:[#allocation5 + $0x3c] sm:$0xf]
    %v137 = vld [vmem:[%s2] sm:$0x1]
    %v138 = vpack.c.bf16 %v120, %v120
    %v140 = vlaneseq
    %v141 = vshrl.u32 %v140, 7
    %v142 = vsub.s32 0, %v141
    %v143 = vrot.slane %v137, %v142
    %v161 = vunpack.c.l.b16 %v121
    %v162 = vunpack.c.l.b16 %v122
    %v163 = vunpack.c.l.b16 %v123
    %v164 = vunpack.c.l.b16 %v124
    %v165 = vunpack.c.l.b16 %v125
    %v166 = vunpack.c.l.b16 %v126
    %v167 = vunpack.c.l.b16 %v127
    %v168 = vunpack.c.l.b16 %v128
    %v169 = vunpack.c.l.b16 %v129
    %v170 = vunpack.c.l.b16 %v130
    %v171 = vunpack.c.l.b16 %v131
    %v172 = vunpack.c.l.b16 %v132
    %v173 = vunpack.c.l.b16 %v133
    %v174 = vunpack.c.l.b16 %v134
    %v175 = vunpack.c.l.b16 %v135
    %v176 = vunpack.c.l.b16 %v136
    %v177 = vpack.c.b16 %v162, %v161
    %v178 = vpack.c.b16 %v164, %v163
    %v179 = vpack.c.b16 %v166, %v165
    %v180 = vpack.c.b16 %v168, %v167
    %v181 = vpack.c.b16 %v170, %v169
    %v182 = vpack.c.b16 %v172, %v171
    %v183 = vpack.c.b16 %v174, %v173
    %v184 = vpack.c.b16 %v176, %v175
    %193 = vmatprep.subr.bf16.mxu0 0
    %194 = vmatpush1.bf16.msra.mxu0 %v177
    %195 = vmatprep.subr.bf16.mxu0 0
    %196 = vmatpush1.bf16.msra.mxu0 %v178
    %197 = vmatprep.subr.bf16.mxu0 0
    %198 = vmatpush1.bf16.msra.mxu0 %v179
    %199 = vmatprep.subr.bf16.mxu0 0
    %200 = vmatpush1.bf16.msra.mxu0 %v180
    %201 = vmatprep.subr.bf16.mxu0 0
    %202 = vmatpush1.bf16.msra.mxu0 %v181
    %203 = vmatprep.subr.bf16.mxu0 0
    %204 = vmatpush1.bf16.msra.mxu0 %v182
    %205 = vmatprep.subr.bf16.mxu0 0
    %206 = vmatpush1.bf16.msra.mxu0 %v183
    %207 = vmatprep.subr.bf16.mxu0 0
    %208 = vmatpush1.bf16.msra.mxu0 %v184
    %209 = vmatprep.subr.bf16.mxu0 0
    %210 = vmatpush1.bf16.msra.mxu0 0
    %211 = vmatprep.subr.bf16.mxu0 0
    %212 = vmatpush1.bf16.msra.mxu0 0
    %213 = vmatprep.subr.bf16.mxu0 0
    %214 = vmatpush1.bf16.msra.mxu0 0
    %215 = vmatprep.subr.bf16.mxu0 0
    %216 = vmatpush1.bf16.msra.mxu0 0
    %217 = vmatprep.subr.bf16.mxu0 0
    %218 = vmatpush1.bf16.msra.mxu0 0
    %219 = vmatprep.subr.bf16.mxu0 0
    %220 = vmatpush1.bf16.msra.mxu0 0
    %221 = vmatprep.subr.bf16.mxu0 0
    %222 = vmatpush1.bf16.msra.mxu0 0
    %223 = vmatprep.subr.bf16.mxu0 0
    %224 = vmatpush1.bf16.msra.mxu0 0
    %225 = vmatprep.mubr.bf16.mxu0 0
    %226 = vmatmul.mubr.bf16.gmra.mrb[0].mxu0 %v138
    %v227 = vpop.f32.mrb[0].mxu0
    %v228 = vadd.f32 %v143, %v227
    %v229 = vpop.f32.mrb[0].mxu0
    %v230 = vpop.f32.mrb[0].mxu0
    %v231 = vpop.f32.mrb[0].mxu0
    %232 = vdwg.mxu0
    %v233 = vmax.f32 %v228, 0.0
    %v234 = vld [vmem:[#allocation7] sm:$0xf]
    %v235 = vld [vmem:[#allocation7 + $0x4] sm:$0xf]
    %v236 = vld [vmem:[#allocation7 + $0x8] sm:$0xf]
    %v237 = vld [vmem:[#allocation7 + $0xc] sm:$0xf]
    %v238 = vld [vmem:[#allocation7 + $0x10] sm:$0xf]
    %v239 = vld [vmem:[#allocation7 + $0x14] sm:$0xf]
    %v240 = vld [vmem:[#allocation7 + $0x18] sm:$0xf]
    %v241 = vld [vmem:[#allocation7 + $0x1c] sm:$0xf]
    %v242 = vld [vmem:[#allocation7 + $0x20] sm:$0xf]
    %v243 = vld [vmem:[#allocation7 + $0x24] sm:$0xf]
    %v244 = vld [vmem:[#allocation7 + $0x28] sm:$0xf]
    %v245 = vld [vmem:[#allocation7 + $0x2c] sm:$0xf]
    %v246 = vld [vmem:[#allocation7 + $0x30] sm:$0xf]
    %v247 = vld [vmem:[#allocation7 + $0x34] sm:$0xf]
    %v248 = vld [vmem:[#allocation7 + $0x38] sm:$0xf]
    %v249 = vld [vmem:[#allocation7 + $0x3c] sm:$0xf]
    %v250 = vld [vmem:[%s4] sm:$0x1]
    %v251 = vpack.c.bf16 %v233, %v233
    %v253 = vlaneseq
    %v254 = vshrl.u32 %v253, 7
    %v255 = vsub.s32 0, %v254
    %v256 = vrot.slane %v250, %v255
    %v274 = vunpack.c.l.b16 %v234
    %v275 = vunpack.c.l.b16 %v235
    %v276 = vunpack.c.l.b16 %v236
    %v277 = vunpack.c.l.b16 %v237
    %v278 = vunpack.c.l.b16 %v238
    %v279 = vunpack.c.l.b16 %v239
    %v280 = vunpack.c.l.b16 %v240
    %v281 = vunpack.c.l.b16 %v241
    %v282 = vunpack.c.l.b16 %v242
    %v283 = vunpack.c.l.b16 %v243
    %v284 = vunpack.c.l.b16 %v244
    %v285 = vunpack.c.l.b16 %v245
    %v286 = vunpack.c.l.b16 %v246
    %v287 = vunpack.c.l.b16 %v247
    %v288 = vunpack.c.l.b16 %v248
    %v289 = vunpack.c.l.b16 %v249
    %v290 = vpack.c.b16 %v275, %v274
    %v291 = vpack.c.b16 %v277, %v276
    %v292 = vpack.c.b16 %v279, %v278
    %v293 = vpack.c.b16 %v281, %v280
    %v294 = vpack.c.b16 %v283, %v282
    %v295 = vpack.c.b16 %v285, %v284
    %v296 = vpack.c.b16 %v287, %v286
    %v297 = vpack.c.b16 %v289, %v288
    %306 = vmatprep.subr.bf16.mxu0 0
    %307 = vmatpush1.bf16.msra.mxu0 %v290
    %308 = vmatprep.subr.bf16.mxu0 0
    %309 = vmatpush1.bf16.msra.mxu0 %v291
    %310 = vmatprep.subr.bf16.mxu0 0
    %311 = vmatpush1.bf16.msra.mxu0 %v292
    %312 = vmatprep.subr.bf16.mxu0 0
    %313 = vmatpush1.bf16.msra.mxu0 %v293
    %314 = vmatprep.subr.bf16.mxu0 0
    %315 = vmatpush1.bf16.msra.mxu0 %v294
    %316 = vmatprep.subr.bf16.mxu0 0
    %317 = vmatpush1.bf16.msra.mxu0 %v295
    %318 = vmatprep.subr.bf16.mxu0 0
    %319 = vmatpush1.bf16.msra.mxu0 %v296
    %320 = vmatprep.subr.bf16.mxu0 0
    %321 = vmatpush1.bf16.msra.mxu0 %v297
    %322 = vmatprep.subr.bf16.mxu0 0
    %323 = vmatpush1.bf16.msra.mxu0 0
    %324 = vmatprep.subr.bf16.mxu0 0
    %325 = vmatpush1.bf16.msra.mxu0 0
    %326 = vmatprep.subr.bf16.mxu0 0
    %327 = vmatpush1.bf16.msra.mxu0 0
    %328 = vmatprep.subr.bf16.mxu0 0
    %329 = vmatpush1.bf16.msra.mxu0 0
    %330 = vmatprep.subr.bf16.mxu0 0
    %331 = vmatpush1.bf16.msra.mxu0 0
    %332 = vmatprep.subr.bf16.mxu0 0
    %333 = vmatpush1.bf16.msra.mxu0 0
    %334 = vmatprep.subr.bf16.mxu0 0
    %335 = vmatpush1.bf16.msra.mxu0 0
    %336 = vmatprep.subr.bf16.mxu0 0
    %337 = vmatpush1.bf16.msra.mxu0 0
    %338 = vmatprep.mubr.bf16.mxu0 0
    %339 = vmatmul.mubr.bf16.gmra.mrb[0].mxu0 %v251
    %v340 = vpop.f32.mrb[0].mxu0
    %v341 = vadd.f32 %v256, %v340
    %v342 = vpop.f32.mrb[0].mxu0
    %v343 = vpop.f32.mrb[0].mxu0
    %v344 = vpop.f32.mrb[0].mxu0
    %345 = vdwg.mxu0
    %v346 = vmax.f32 %v341, 0.0
    %v347 = vld [vmem:[#allocation8] sm:$0xf]
    %v348 = vld [vmem:[#allocation8 + $0x4] sm:$0xf]
    %v349 = vld [vmem:[#allocation8 + $0x8] sm:$0xf]
    %v350 = vld [vmem:[#allocation8 + $0xc] sm:$0xf]
    %v351 = vld [vmem:[#allocation8 + $0x10] sm:$0xf]
    %v352 = vld [vmem:[#allocation8 + $0x14] sm:$0xf]
    %v353 = vld [vmem:[#allocation8 + $0x18] sm:$0xf]
    %v354 = vld [vmem:[#allocation8 + $0x1c] sm:$0xf]
    %v355 = vld [vmem:[#allocation8 + $0x20] sm:$0xf]
    %v356 = vld [vmem:[#allocation8 + $0x24] sm:$0xf]
    %v357 = vld [vmem:[#allocation8 + $0x28] sm:$0xf]
    %v358 = vld [vmem:[#allocation8 + $0x2c] sm:$0xf]
    %v359 = vld [vmem:[#allocation8 + $0x30] sm:$0xf]
    %v360 = vld [vmem:[#allocation8 + $0x34] sm:$0xf]
    %v361 = vld [vmem:[#allocation8 + $0x38] sm:$0xf]
    %v362 = vld [vmem:[#allocation8 + $0x3c] sm:$0xf]
    %v363 = vld [vmem:[%s6] sm:$0x1]
    %v364 = vpack.c.bf16 %v346, %v346
    %v366 = vlaneseq
    %v367 = vshrl.u32 %v366, 7
    %v368 = vsub.s32 0, %v367
    %v369 = vrot.slane %v363, %v368
    %v387 = vunpack.c.l.b16 %v347
    %v388 = vunpack.c.l.b16 %v348
    %v389 = vunpack.c.l.b16 %v349
    %v390 = vunpack.c.l.b16 %v350
    %v391 = vunpack.c.l.b16 %v351
    %v392 = vunpack.c.l.b16 %v352
    %v393 = vunpack.c.l.b16 %v353
    %v394 = vunpack.c.l.b16 %v354
    %v395 = vunpack.c.l.b16 %v355
    %v396 = vunpack.c.l.b16 %v356
    %v397 = vunpack.c.l.b16 %v357
    %v398 = vunpack.c.l.b16 %v358
    %v399 = vunpack.c.l.b16 %v359
    %v400 = vunpack.c.l.b16 %v360
    %v401 = vunpack.c.l.b16 %v361
    %v402 = vunpack.c.l.b16 %v362
    %v403 = vpack.c.b16 %v388, %v387
    %v404 = vpack.c.b16 %v390, %v389
    %v405 = vpack.c.b16 %v392, %v391
    %v406 = vpack.c.b16 %v394, %v393
    %v407 = vpack.c.b16 %v396, %v395
    %v408 = vpack.c.b16 %v398, %v397
    %v409 = vpack.c.b16 %v400, %v399
    %v410 = vpack.c.b16 %v402, %v401
    %419 = vmatprep.subr.bf16.mxu0 0
    %420 = vmatpush1.bf16.msra.mxu0 %v403
    %421 = vmatprep.subr.bf16.mxu0 0
    %422 = vmatpush1.bf16.msra.mxu0 %v404
    %423 = vmatprep.subr.bf16.mxu0 0
    %424 = vmatpush1.bf16.msra.mxu0 %v405
    %425 = vmatprep.subr.bf16.mxu0 0
    %426 = vmatpush1.bf16.msra.mxu0 %v406
    %427 = vmatprep.subr.bf16.mxu0 0
    %428 = vmatpush1.bf16.msra.mxu0 %v407
    %429 = vmatprep.subr.bf16.mxu0 0
    %430 = vmatpush1.bf16.msra.mxu0 %v408
    %431 = vmatprep.subr.bf16.mxu0 0
    %432 = vmatpush1.bf16.msra.mxu0 %v409
    %433 = vmatprep.subr.bf16.mxu0 0
    %434 = vmatpush1.bf16.msra.mxu0 %v410
    %435 = vmatprep.subr.bf16.mxu0 0
    %436 = vmatpush1.bf16.msra.mxu0 0
    %437 = vmatprep.subr.bf16.mxu0 0
    %438 = vmatpush1.bf16.msra.mxu0 0
    %439 = vmatprep.subr.bf16.mxu0 0
    %440 = vmatpush1.bf16.msra.mxu0 0
    %441 = vmatprep.subr.bf16.mxu0 0
    %442 = vmatpush1.bf16.msra.mxu0 0
    %443 = vmatprep.subr.bf16.mxu0 0
    %444 = vmatpush1.bf16.msra.mxu0 0
    %445 = vmatprep.subr.bf16.mxu0 0
    %446 = vmatpush1.bf16.msra.mxu0 0
    %447 = vmatprep.subr.bf16.mxu0 0
    %448 = vmatpush1.bf16.msra.mxu0 0
    %449 = vmatprep.subr.bf16.mxu0 0
    %450 = vmatpush1.bf16.msra.mxu0 0
    %451 = vmatprep.mubr.bf16.mxu0 0
    %452 = vmatmul.mubr.bf16.gmra.mrb[0].mxu0 %v364
    %v453 = vpop.f32.mrb[0].mxu0
    %v454 = vadd.f32 %v369, %v453
    %v455 = vpop.f32.mrb[0].mxu0
    %v456 = vpop.f32.mrb[0].mxu0
    %v457 = vpop.f32.mrb[0].mxu0
    %458 = vdwg.mxu0
    %v459 = vmax.f32 %v454, 0.0
    %v460 = vld [vmem:[#allocation10] sm:$0xf]
    %v461 = vld [vmem:[#allocation10 + $0x4] sm:$0xf]
    %v462 = vld [vmem:[#allocation10 + $0x8] sm:$0xf]
    %v463 = vld [vmem:[#allocation10 + $0xc] sm:$0xf]
    %v464 = vld [vmem:[#allocation10 + $0x10] sm:$0xf]
    %v465 = vld [vmem:[#allocation10 + $0x14] sm:$0xf]
    %v466 = vld [vmem:[#allocation10 + $0x18] sm:$0xf]
    %v467 = vld [vmem:[#allocation10 + $0x1c] sm:$0xf]
    %v468 = vld [vmem:[#allocation10 + $0x20] sm:$0xf]
    %v469 = vld [vmem:[#allocation10 + $0x24] sm:$0xf]
    %v470 = vld [vmem:[#allocation10 + $0x28] sm:$0xf]
    %v471 = vld [vmem:[#allocation10 + $0x2c] sm:$0xf]
    %v472 = vld [vmem:[#allocation10 + $0x30] sm:$0xf]
    %v473 = vld [vmem:[#allocation10 + $0x34] sm:$0xf]
    %v474 = vld [vmem:[#allocation10 + $0x38] sm:$0xf]
    %v475 = vld [vmem:[#allocation10 + $0x3c] sm:$0xf]
    %v476 = vld [vmem:[%s8] sm:$0x1]
    %v477 = vpack.c.bf16 %v459, %v459
    %v479 = vlaneseq
    %v480 = vshrl.u32 %v479, 7
    %v481 = vsub.s32 0, %v480
    %v482 = vrot.slane %v476, %v481
    %v500 = vunpack.c.l.b16 %v460
    %v501 = vunpack.c.l.b16 %v461
    %v502 = vunpack.c.l.b16 %v462
    %v503 = vunpack.c.l.b16 %v463
    %v504 = vunpack.c.l.b16 %v464
    %v505 = vunpack.c.l.b16 %v465
    %v506 = vunpack.c.l.b16 %v466
    %v507 = vunpack.c.l.b16 %v467
    %v508 = vunpack.c.l.b16 %v468
    %v509 = vunpack.c.l.b16 %v469
    %v510 = vunpack.c.l.b16 %v470
    %v511 = vunpack.c.l.b16 %v471
    %v512 = vunpack.c.l.b16 %v472
    %v513 = vunpack.c.l.b16 %v473
    %v514 = vunpack.c.l.b16 %v474
    %v515 = vunpack.c.l.b16 %v475
    %v516 = vpack.c.b16 %v501, %v500
    %v517 = vpack.c.b16 %v503, %v502
    %v518 = vpack.c.b16 %v505, %v504
    %v519 = vpack.c.b16 %v507, %v506
    %v520 = vpack.c.b16 %v509, %v508
    %v521 = vpack.c.b16 %v511, %v510
    %v522 = vpack.c.b16 %v513, %v512
    %v523 = vpack.c.b16 %v515, %v514
    %532 = vmatprep.subr.bf16.mxu0 0
    %533 = vmatpush1.bf16.msra.mxu0 %v516
    %534 = vmatprep.subr.bf16.mxu0 0
    %535 = vmatpush1.bf16.msra.mxu0 %v517
    %536 = vmatprep.subr.bf16.mxu0 0
    %537 = vmatpush1.bf16.msra.mxu0 %v518
    %538 = vmatprep.subr.bf16.mxu0 0
    %539 = vmatpush1.bf16.msra.mxu0 %v519
    %540 = vmatprep.subr.bf16.mxu0 0
    %541 = vmatpush1.bf16.msra.mxu0 %v520
    %542 = vmatprep.subr.bf16.mxu0 0
    %543 = vmatpush1.bf16.msra.mxu0 %v521
    %544 = vmatprep.subr.bf16.mxu0 0
    %545 = vmatpush1.bf16.msra.mxu0 %v522
    %546 = vmatprep.subr.bf16.mxu0 0
    %547 = vmatpush1.bf16.msra.mxu0 %v523
    %548 = vmatprep.subr.bf16.mxu0 0
    %549 = vmatpush1.bf16.msra.mxu0 0
    %550 = vmatprep.subr.bf16.mxu0 0
    %551 = vmatpush1.bf16.msra.mxu0 0
    %552 = vmatprep.subr.bf16.mxu0 0
    %553 = vmatpush1.bf16.msra.mxu0 0
    %554 = vmatprep.subr.bf16.mxu0 0
    %555 = vmatpush1.bf16.msra.mxu0 0
    %556 = vmatprep.subr.bf16.mxu0 0
    %557 = vmatpush1.bf16.msra.mxu0 0
    %558 = vmatprep.subr.bf16.mxu0 0
    %559 = vmatpush1.bf16.msra.mxu0 0
    %560 = vmatprep.subr.bf16.mxu0 0
    %561 = vmatpush1.bf16.msra.mxu0 0
    %562 = vmatprep.subr.bf16.mxu0 0
    %563 = vmatpush1.bf16.msra.mxu0 0
    %564 = vmatprep.mubr.bf16.mxu0 0
    %565 = vmatmul.mubr.bf16.gmra.mrb[0].mxu0 %v477
    %v566 = vpop.f32.mrb[0].mxu0
    %v567 = vadd.f32 %v482, %v566
    %v568 = vpop.f32.mrb[0].mxu0
    %v569 = vpop.f32.mrb[0].mxu0
    %v570 = vpop.f32.mrb[0].mxu0
    %571 = vdwg.mxu0
    %v572 = vmax.f32 %v567, 0.0
    %v573 = vld [vmem:[#allocation11] sm:$0xf]
    %v574 = vld [vmem:[#allocation11 + $0x4] sm:$0xf]
    %v575 = vld [vmem:[#allocation11 + $0x8] sm:$0xf]
    %v576 = vld [vmem:[#allocation11 + $0xc] sm:$0xf]
    %v577 = vld [vmem:[#allocation11 + $0x10] sm:$0xf]
    %v578 = vld [vmem:[#allocation11 + $0x14] sm:$0xf]
    %v579 = vld [vmem:[#allocation11 + $0x18] sm:$0xf]
    %v580 = vld [vmem:[#allocation11 + $0x1c] sm:$0xf]
    %v581 = vld [vmem:[#allocation11 + $0x20] sm:$0xf]
    %v582 = vld [vmem:[#allocation11 + $0x24] sm:$0xf]
    %v583 = vld [vmem:[#allocation11 + $0x28] sm:$0xf]
    %v584 = vld [vmem:[#allocation11 + $0x2c] sm:$0xf]
    %v585 = vld [vmem:[#allocation11 + $0x30] sm:$0xf]
    %v586 = vld [vmem:[#allocation11 + $0x34] sm:$0xf]
    %v587 = vld [vmem:[#allocation11 + $0x38] sm:$0xf]
    %v588 = vld [vmem:[#allocation11 + $0x3c] sm:$0xf]
    %v589 = vld [vmem:[%s10] sm:$0x1]
    %v590 = vpack.c.bf16 %v572, %v572
    %v592 = vlaneseq
    %v593 = vshrl.u32 %v592, 7
    %v594 = vsub.s32 0, %v593
    %v595 = vrot.slane %v589, %v594
    %v613 = vunpack.c.l.b16 %v573
    %v614 = vunpack.c.l.b16 %v574
    %v615 = vunpack.c.l.b16 %v575
    %v616 = vunpack.c.l.b16 %v576
    %v617 = vunpack.c.l.b16 %v577
    %v618 = vunpack.c.l.b16 %v578
    %v619 = vunpack.c.l.b16 %v579
    %v620 = vunpack.c.l.b16 %v580
    %v621 = vunpack.c.l.b16 %v581
    %v622 = vunpack.c.l.b16 %v582
    %v623 = vunpack.c.l.b16 %v583
    %v624 = vunpack.c.l.b16 %v584
    %v625 = vunpack.c.l.b16 %v585
    %v626 = vunpack.c.l.b16 %v586
    %v627 = vunpack.c.l.b16 %v587
    %v628 = vunpack.c.l.b16 %v588
    %v629 = vpack.c.b16 %v614, %v613
    %v630 = vpack.c.b16 %v616, %v615
    %v631 = vpack.c.b16 %v618, %v617
    %v632 = vpack.c.b16 %v620, %v619
    %v633 = vpack.c.b16 %v622, %v621
    %v634 = vpack.c.b16 %v624, %v623
    %v635 = vpack.c.b16 %v626, %v625
    %v636 = vpack.c.b16 %v628, %v627
    %645 = vmatprep.subr.bf16.mxu0 0
    %646 = vmatpush1.bf16.msra.mxu0 %v629
    %647 = vmatprep.subr.bf16.mxu0 0
    %648 = vmatpush1.bf16.msra.mxu0 %v630
    %649 = vmatprep.subr.bf16.mxu0 0
    %650 = vmatpush1.bf16.msra.mxu0 %v631
    %651 = vmatprep.subr.bf16.mxu0 0
    %652 = vmatpush1.bf16.msra.mxu0 %v632
    %653 = vmatprep.subr.bf16.mxu0 0
    %654 = vmatpush1.bf16.msra.mxu0 %v633
    %655 = vmatprep.subr.bf16.mxu0 0
    %656 = vmatpush1.bf16.msra.mxu0 %v634
    %657 = vmatprep.subr.bf16.mxu0 0
    %658 = vmatpush1.bf16.msra.mxu0 %v635
    %659 = vmatprep.subr.bf16.mxu0 0
    %660 = vmatpush1.bf16.msra.mxu0 %v636
    %661 = vmatprep.subr.bf16.mxu0 0
    %662 = vmatpush1.bf16.msra.mxu0 0
    %663 = vmatprep.subr.bf16.mxu0 0
    %664 = vmatpush1.bf16.msra.mxu0 0
    %665 = vmatprep.subr.bf16.mxu0 0
    %666 = vmatpush1.bf16.msra.mxu0 0
    %667 = vmatprep.subr.bf16.mxu0 0
    %668 = vmatpush1.bf16.msra.mxu0 0
    %669 = vmatprep.subr.bf16.mxu0 0
    %670 = vmatpush1.bf16.msra.mxu0 0
    %671 = vmatprep.subr.bf16.mxu0 0
    %672 = vmatpush1.bf16.msra.mxu0 0
    %673 = vmatprep.subr.bf16.mxu0 0
    %674 = vmatpush1.bf16.msra.mxu0 0
    %675 = vmatprep.subr.bf16.mxu0 0
    %676 = vmatpush1.bf16.msra.mxu0 0
    %677 = vmatprep.mubr.bf16.mxu0 0
    %678 = vmatmul.mubr.bf16.gmra.mrb[0].mxu0 %v590
    %v679 = vpop.f32.mrb[0].mxu0
    %v680 = vadd.f32 %v595, %v679
    %v681 = vpop.f32.mrb[0].mxu0
    %v682 = vpop.f32.mrb[0].mxu0
    %v683 = vpop.f32.mrb[0].mxu0
    %684 = vdwg.mxu0
    %v685 = vmax.f32 %v680, 0.0
    %686 = vst [vmem:[#allocation13] sm:$0xff] %v685
    // Predicated region
    $region70: #{tpu_custom_call.1} parent=1 // pred_check
      _
    $region71: #{tpu_custom_call.1} parent=1 // pred_check_branch
      %688 = sbr.rel (0) target = $region73
    $region72: #{tpu_custom_call.1} parent=1 // pred_region
      %s690 = ssub.s32 128, 128
      %691 = vsyncadd [#allocation4], %s690
      %s693 = sshll.u32 [#allocation13], 4
      %s694 = int_to_ptr.vmem [resolvable:$true] %s693
      %696 = dma.vmem_to_hbm [thread:$0]  %s694, 128, %s11, [#allocation4]
    $region73: #{tpu_custom_call.1} parent=1 // pred_fallthru
      _
    // Predicated region
    $region74: #{tpu_custom_call.1} parent=1 // pred_check
      _
    $region75: #{tpu_custom_call.1} parent=1 // pred_check_branch
      %698 = sbr.rel (0) target = $region77
    $region76: #{tpu_custom_call.1} parent=1 // pred_region
      %699 = dma.done [#allocation4], 128
    $region77: #{tpu_custom_call.1} parent=1 // pred_fallthru
      _
    %700 = vsyncpa [#allocation3], 1
    %701 = vsyncpa [#allocation6], 1
    %702 = vsyncpa [#allocation9], 1
    %703 = vsyncpa [#allocation12], 1
    %704 = vsyncpa [#allocation4], 1

</llo_original>
